<compile_context>
chip_gen: v5e
topology: v5e:2x2
jax: 0.10.0
libtpu: 0.0.40
codegen_flags: <defaults>
</compile_context>

<pallas_src>
import jax
import jax.numpy as jnp
from jax.experimental import pallas as pl
from jax.experimental.pallas import tpu as pltpu


def edge_gat_kernel(xy_ref, z_ref, adj_ref, w_node_ref, w_edge_ref, v_e_ref,
                    out_ref):
    bt, nn, k_node = xy_ref.shape
    in_e, ma_n, op_n = z_ref.shape[1], z_ref.shape[2], z_ref.shape[3]
    out_dim = w_edge_ref.shape[1]

    w_node = w_node_ref[...]                      # (K, OUT+1), K = IN_OP+IN_MA
    w_edge = w_edge_ref[...]                      # (IN_E, OUT)
    v_e = v_e_ref[...]                            # (IN_E, 1) = w_edge @ a_edge^T

    # ---- fused node projection + logit columns: one MXU dot ---------------
    # xy is [x | 0] rows for OP nodes and [0 | y] rows for MA nodes, so the
    # stacked weight acts block-diagonally; the last weight column carries
    # the folded attention vector (a_op / a_ma respectively).
    xy2 = xy_ref[...].reshape(bt * nn, k_node)
    h_all = jnp.dot(xy2, w_node, preferred_element_type=jnp.float32)
    h_all = h_all.reshape(bt, nn, out_dim + 1)
    h_op3 = h_all[:, :op_n, :out_dim]             # (bt, OP, OUT)
    h3 = h_all[:, op_n:, :out_dim]                # (bt, MA, OUT)
    e_op = jnp.sum(h_all[:, :op_n, out_dim:], axis=-1)[:, None, :]  # (bt,1,OP)
    e_ma = h_all[:, op_n:, out_dim:]              # (bt, MA, 1)

    # ---- attention logits, natively in (bt, MA, OP) layout -----------------
    # Edge term with w_edge folded into the attention vector:
    #   e_edge[b,m,n] = sum_i z[b,i,m,n] * v_e[i]
    z4 = z_ref[...]                               # (bt, IN_E, MA, OP)
    e_edge = jnp.zeros((bt, ma_n, op_n), jnp.float32)
    for i in range(in_e):                         # static unroll; IN_E tiny
        # TODO(synk): convert to lax.fori_loop(unroll=True) if IN_E grows.
        e_edge = e_edge + z4[:, i] * v_e[i:i + 1, 0:1]

    e = e_ma + e_op + e_edge                      # (bt, MA, OP)
    e = jnp.where(e >= 0, e, 0.01 * e)            # leaky_relu

    # ---- masked softmax over OP --------------------------------------------
    adj = adj_ref[...]                            # (bt, MA, OP)
    row_empty = jnp.max(adj, axis=-1, keepdims=True) <= 0          # (bt,MA,1)
    logits = jnp.where(adj > 0, e, -jnp.inf)
    logits = jnp.where(row_empty, 0.0, logits)    # attention[mask] = 0
    mx = jnp.max(logits, axis=-1, keepdims=True)
    p = jnp.exp(logits - mx)
    attn = p / jnp.sum(p, axis=-1, keepdims=True)

    # ---- aggregation: h'[b,m] = sum_n attn[b,m,n]*(h_op[b,n] + z[b,:,m,n]@We)
    op_part = jnp.einsum('bmn,bno->bmo', attn, h_op3,
                         preferred_element_type=jnp.float32)        # (bt,MA,OUT)

    # s[b,m,i] = sum_n attn[b,m,n] * z[b,i,m,n]; edge_part = s @ w_edge.
    # s is assembled lane-by-lane with one-hot placement (cheap, avoids an
    # in-kernel lane concat/transpose), then contracted on the MXU.
    lane_ids = jax.lax.broadcasted_iota(jnp.int32, (1, in_e), 1)
    s = jnp.zeros((bt, ma_n, in_e), jnp.float32)
    for i in range(in_e):                         # static unroll; IN_E tiny
        s_i = jnp.sum(attn * z4[:, i], axis=-1, keepdims=True)      # (bt,MA,1)
        s = s + s_i * (lane_ids == i).astype(jnp.float32)
    edge_part = jnp.dot(s.reshape(bt * ma_n, in_e), w_edge,
                        preferred_element_type=jnp.float32)
    edge_part = edge_part.reshape(bt, ma_n, out_dim)

    h_prime = jnp.where(row_empty, 0.0, op_part + edge_part) + h3
    out_ref[...] = jnp.where(h_prime >= 0, h_prime, jnp.exp(h_prime) - 1.0)


def _round_up(v, m):
    return ((v + m - 1) // m) * m


def _vmem_budget_bytes():
    """Generation-aware VMEM budget: half of physical VMEM (v5e/v6e: 128 MiB,
    v7x: 64 MiB), with a conservative fallback if the query is unavailable."""
    try:
        cap = int(pltpu.get_tpu_info().vmem_capacity_bytes)
    except Exception:
        cap = 64 << 20
    return cap // 2


def _block_bytes(bt, op_n, ma_n, k_node, in_e, out_dim):
    """Approximate f32 VMEM footprint of one grid step's blocks (padded to
    (8,128) tiles), x2 for the pipeline's double buffering."""
    def tile(rows, cols):
        return _round_up(max(rows, 1), 8) * _round_up(max(cols, 1), 128) * 4
    xy = bt * tile(op_n + ma_n, k_node)
    z = bt * in_e * tile(ma_n, op_n)
    adj = bt * tile(ma_n, op_n)
    out = bt * tile(ma_n, out_dim)
    consts = tile(k_node, out_dim + 1) + tile(in_e, out_dim) + tile(in_e, 1)
    return 2 * (xy + z + adj + out + consts)


def _pick_block_b(batch, op_n, ma_n, k_node, in_e, out_dim, budget):
    """Largest batch-block divisor of B whose double-buffered VMEM footprint
    fits the budget.  No forced minimum grid length: at tiny shapes a single
    grid step avoids the ~0.35 us/step pipeline overhead (v5e/v6e have one
    TensorCore; v7x megacore split only pays when per-step work is large)."""
    best = 1
    for bt in range(1, batch + 1):
        if batch % bt:
            continue
        if _block_bytes(bt, op_n, ma_n, k_node, in_e, out_dim) <= budget:
            best = bt
    return best


def embed_ma_forward(x, y, z, op_ma_adj, w_op, w_ma, w_edge, attn_vec,
                     *, block_b=None):
    B, OP, IN_OP = x.shape
    MA, IN_MA = y.shape[1], y.shape[2]
    IN_E = z.shape[-1]
    OUT = w_op.shape[1]
    K = IN_OP + IN_MA

    # ---- wrapper-side constant folding (once per call, tiny tensors) -------
    a_op = attn_vec[:, :OUT]
    a_ma = attn_vec[:, OUT:2 * OUT]
    a_edge = attn_vec[:, 2 * OUT:]
    w_op_aug = jnp.concatenate([w_op, w_op @ a_op.T], axis=1)   # (IN_OP, OUT+1)
    w_ma_aug = jnp.concatenate([w_ma, w_ma @ a_ma.T], axis=1)   # (IN_MA, OUT+1)
    w_node = jnp.concatenate([w_op_aug, w_ma_aug], axis=0)      # (K, OUT+1)
    v_e = w_edge @ a_edge.T                                     # (IN_E, 1)

    # Stacked, zero-padded node features so a single MXU dot against the
    # block-structured w_node projects both node types.
    x_pad = jnp.pad(x, ((0, 0), (0, 0), (0, IN_MA)))            # (B, OP, K)
    y_pad = jnp.pad(y, ((0, 0), (0, 0), (IN_OP, 0)))            # (B, MA, K)
    xy = jnp.concatenate([x_pad, y_pad], axis=1)                # (B, OP+MA, K)

    # Layout plumbing: put the graph dim OP on the lane axis for the kernel.
    # TODO(synk): at large OP/MA have the producer emit z as (B, IN_E, MA, OP)
    # (or fold the relayout into the kernel DMA) to avoid z crossing HBM 3x;
    # consider streaming z as bf16 and upcasting after the VMEM load.
    adj_t = jnp.transpose(op_ma_adj, (0, 2, 1))                 # (B, MA, OP)
    z_t = jnp.transpose(z, (0, 3, 2, 1))                        # (B, IN_E, MA, OP)

    budget = _vmem_budget_bytes()
    bt = _pick_block_b(B, OP, MA, K, IN_E, OUT, budget) if block_b is None \
        else block_b
    assert B % bt == 0, "block_b must divide the batch size"
    grid = (B // bt,)

    # TODO(synk): at much larger OP, add an OP grid axis ('arbitrary') with a
    # VMEM accumulator for the online softmax, keeping the z tile within the
    # per-generation VMEM budget above.
    out = pl.pallas_call(
        edge_gat_kernel,
        out_shape=jax.ShapeDtypeStruct((B, MA, OUT), jnp.float32),
        grid=grid,
        in_specs=[
            pl.BlockSpec((bt, OP + MA, K), lambda b: (b, 0, 0)),
            pl.BlockSpec((bt, IN_E, MA, OP), lambda b: (b, 0, 0, 0)),
            pl.BlockSpec((bt, MA, OP), lambda b: (b, 0, 0)),
            pl.BlockSpec((K, OUT + 1), lambda b: (0, 0)),
            pl.BlockSpec((IN_E, OUT), lambda b: (0, 0)),
            pl.BlockSpec((IN_E, 1), lambda b: (0, 0)),
        ],
        out_specs=pl.BlockSpec((bt, MA, OUT), lambda b: (b, 0, 0)),
        compiler_params=pltpu.CompilerParams(
            dimension_semantics=("parallel",),
            vmem_limit_bytes=int(budget)),
    )(xy, z_t, adj_t, w_node, w_edge, v_e)
    return out


def xavier_uniform(key, shape):
    fan_in, fan_out = shape[0], shape[1]
    limit = (6.0 / (fan_in + fan_out)) ** 0.5
    return jax.random.uniform(key, shape, jnp.float32, -limit, limit)


def reference_forward(x, y, z, op_ma_adj, w_op, w_ma, w_edge, a):
    # Pure-JAX reference mirroring the PyTorch module (validation only).
    B, OP, _ = x.shape
    MA = y.shape[1]
    OUT = w_op.shape[1]
    h_op = jnp.einsum('bni,io->bno', x, w_op)                         # (B, OP, OUT)
    h = jnp.einsum('bmi,io->bmo', y, w_ma)                            # (B, MA, OUT)
    h_edge = jnp.einsum('bnmi,io->bnmo', z, w_edge)                   # (B, OP, MA, OUT)
    h_edge_t = jnp.transpose(h_edge, (0, 2, 1, 3))                    # (B, MA, OP, OUT)
    h_op_b = jnp.broadcast_to(h_op[:, None], (B, MA, OP, OUT))
    h_ma_b = jnp.broadcast_to(h[:, :, None], (B, MA, OP, OUT))
    all_comb = jnp.concatenate([h_op_b, h_ma_b, h_edge_t], axis=-1)   # (B, MA, OP, 3*OUT)
    e = jnp.squeeze(all_comb @ a.T, -1)                               # (B, MA, OP)
    e = jnp.where(e >= 0, e, 0.01 * e)
    adj = jnp.transpose(op_ma_adj, (0, 2, 1))                         # (B, MA, OP)
    mask = jnp.all(adj == 0, axis=-1, keepdims=True)                  # (B, MA, 1)
    attn = jnp.where(adj > 0, e, -jnp.inf)
    attn = jnp.where(mask, 0.0, attn)
    attn = jax.nn.softmax(attn, axis=-1)
    h_op_edge = h_op_b + h_edge_t
    h_prime = jnp.einsum('bmn,bmno->bmo', attn, h_op_edge)
    h_prime = jnp.where(mask, 0.0, h_prime) + h
    return jnp.where(h_prime >= 0, h_prime, jnp.exp(h_prime) - 1.0)


if __name__ == "__main__":
    B, OP, MA = 2, 10, 8
    IN_OP, IN_MA, IN_E, OUT = 6, 5, 4, 16

    key = jax.random.PRNGKey(0)
    k = jax.random.split(key, 8)

    x = jax.random.normal(k[0], (B, OP, IN_OP), jnp.float32)
    y = jax.random.normal(k[1], (B, MA, IN_MA), jnp.float32)
    z = jax.random.normal(k[2], (B, OP, MA, IN_E), jnp.float32)
    op_ma_adj = jax.random.bernoulli(k[3], 0.5, (B, OP, MA)).astype(jnp.float32)

    w_op = xavier_uniform(k[4], (IN_OP, OUT))
    w_ma = xavier_uniform(k[5], (IN_MA, OUT))
    w_edge = xavier_uniform(k[6], (IN_E, OUT))
    attn_vec = xavier_uniform(k[7], (1, 3 * OUT))

    out = embed_ma_forward(x, y, z, op_ma_adj, w_op, w_ma, w_edge, attn_vec)
    out = jax.block_until_ready(out)

    ref = reference_forward(x, y, z, op_ma_adj, w_op, w_ma, w_edge, attn_vec)
    assert out.shape == (B, MA, OUT)
    # Exact softmax divide + fp32 throughout; only re-association noise left.
    assert jnp.allclose(out, ref, atol=1e-4, rtol=1e-4), "mismatch vs reference"

    print("KERNEL_OK")
</pallas_src>

<mosaic_0001>
module attributes {stable_mosaic.version = 11 : i64} {
  func.func @edge_gat_kernel(%arg0: i32, %arg1: memref<2x18x11xf32, #tpu.memory_space<vmem>>, %arg2: memref<2x4x8x10xf32, #tpu.memory_space<vmem>>, %arg3: memref<2x8x10xf32, #tpu.memory_space<vmem>>, %arg4: memref<11x17xf32, #tpu.memory_space<vmem>>, %arg5: memref<4x16xf32, #tpu.memory_space<vmem>>, %arg6: memref<4x1xf32, #tpu.memory_space<vmem>>, %arg7: memref<2x8x16xf32, #tpu.memory_space<vmem>>) attributes {dimension_semantics = [#tpu.dimension_semantics<parallel>], iteration_bounds = array<i64: 1>, scalar_prefetch = 0 : i64, scratch_operands = 0 : i64, tpu.core_type = #tpu.core_type<tc>, window_params = [{transform_indices = @transform_0, window_bounds = array<i64: 2, 18, 11>}, {transform_indices = @transform_1, window_bounds = array<i64: 2, 4, 8, 10>}, {transform_indices = @transform_2, window_bounds = array<i64: 2, 8, 10>}, {pipeline_mode = #tpu.pipeline_mode<synchronous>, transform_indices = @transform_3, window_bounds = array<i64: 11, 17>}, {pipeline_mode = #tpu.pipeline_mode<synchronous>, transform_indices = @transform_4, window_bounds = array<i64: 4, 16>}, {pipeline_mode = #tpu.pipeline_mode<synchronous>, transform_indices = @transform_5, window_bounds = array<i64: 4, 1>}, {transform_indices = @transform_6, window_bounds = array<i64: 2, 8, 16>}]} {
    %c0 = arith.constant 0 : index
    %c0_0 = arith.constant 0 : index
    %0 = vector.load %arg4[%c0, %c0_0] : memref<11x17xf32, #tpu.memory_space<vmem>>, vector<11x17xf32>
    %c0_1 = arith.constant 0 : index
    %c0_2 = arith.constant 0 : index
    %1 = vector.load %arg5[%c0_1, %c0_2] : memref<4x16xf32, #tpu.memory_space<vmem>>, vector<4x16xf32>
    %c0_3 = arith.constant 0 : index
    %c0_4 = arith.constant 0 : index
    %2 = vector.load %arg6[%c0_3, %c0_4] : memref<4x1xf32, #tpu.memory_space<vmem>>, vector<4x1xf32>
    %c0_5 = arith.constant 0 : index
    %c0_6 = arith.constant 0 : index
    %c0_7 = arith.constant 0 : index
    %3 = vector.load %arg1[%c0_5, %c0_6, %c0_7] : memref<2x18x11xf32, #tpu.memory_space<vmem>>, vector<2x18x11xf32>
    %4 = vector.shape_cast %3 : vector<2x18x11xf32> to vector<36x11xf32>
    %cst = arith.constant dense<0.000000e+00> : vector<36x17xf32>
    %5 = tpu.matmul %4, %0, %cst {dimension_numbers = #tpu.dot_dimension_numbers<[1], [0], [0], [1], [0, 0, 1, 1], [], []>} : vector<36x11xf32>, vector<11x17xf32>, vector<36x17xf32> -> vector<36x17xf32>
    %6 = vector.shape_cast %5 : vector<36x17xf32> to vector<2x18x17xf32>
    %7 = vector.extract_strided_slice %6 {offsets = [0, 0, 0], sizes = [2, 10, 16], strides = [1, 1, 1]} : vector<2x18x17xf32> to vector<2x10x16xf32>
    %8 = vector.extract_strided_slice %6 {offsets = [0, 10, 0], sizes = [2, 8, 16], strides = [1, 1, 1]} : vector<2x18x17xf32> to vector<2x8x16xf32>
    %9 = vector.extract_strided_slice %6 {offsets = [0, 0, 16], sizes = [2, 10, 1], strides = [1, 1, 1]} : vector<2x18x17xf32> to vector<2x10x1xf32>
    %cst_8 = arith.constant dense<0.000000e+00> : vector<2x10xf32>
    %10 = vector.multi_reduction <add>, %9, %cst_8 [2] : vector<2x10x1xf32> to vector<2x10xf32>
    %11 = vector.shape_cast %10 : vector<2x10xf32> to vector<2x1x10xf32>
    %12 = vector.extract_strided_slice %6 {offsets = [0, 10, 16], sizes = [2, 8, 1], strides = [1, 1, 1]} : vector<2x18x17xf32> to vector<2x8x1xf32>
    %c0_9 = arith.constant 0 : index
    %c0_10 = arith.constant 0 : index
    %c0_11 = arith.constant 0 : index
    %c0_12 = arith.constant 0 : index
    %13 = vector.load %arg2[%c0_9, %c0_10, %c0_11, %c0_12] : memref<2x4x8x10xf32, #tpu.memory_space<vmem>>, vector<2x4x8x10xf32>
    %cst_13 = arith.constant 0.000000e+00 : f32
    %14 = vector.broadcast %cst_13 : f32 to vector<2x8x10xf32>
    %15 = vector.extract_strided_slice %13 {offsets = [0, 0, 0, 0], sizes = [2, 1, 8, 10], strides = [1, 1, 1, 1]} : vector<2x4x8x10xf32> to vector<2x1x8x10xf32>
    %16 = vector.shape_cast %15 : vector<2x1x8x10xf32> to vector<2x8x10xf32>
    %17 = vector.extract_strided_slice %2 {offsets = [0, 0], sizes = [1, 1], strides = [1, 1]} : vector<4x1xf32> to vector<1x1xf32>
    %18 = vector.shape_cast %17 : vector<1x1xf32> to vector<1x1x1xf32>
    %19 = vector.broadcast %18 : vector<1x1x1xf32> to vector<2x8x10xf32>
    %20 = arith.mulf %16, %19 : vector<2x8x10xf32>
    %21 = arith.addf %14, %20 : vector<2x8x10xf32>
    %22 = vector.extract_strided_slice %13 {offsets = [0, 1, 0, 0], sizes = [2, 1, 8, 10], strides = [1, 1, 1, 1]} : vector<2x4x8x10xf32> to vector<2x1x8x10xf32>
    %23 = vector.shape_cast %22 : vector<2x1x8x10xf32> to vector<2x8x10xf32>
    %24 = vector.extract_strided_slice %2 {offsets = [1, 0], sizes = [1, 1], strides = [1, 1]} : vector<4x1xf32> to vector<1x1xf32>
    %25 = vector.shape_cast %24 : vector<1x1xf32> to vector<1x1x1xf32>
    %26 = vector.broadcast %25 : vector<1x1x1xf32> to vector<2x8x10xf32>
    %27 = arith.mulf %23, %26 : vector<2x8x10xf32>
    %28 = arith.addf %21, %27 : vector<2x8x10xf32>
    %29 = vector.extract_strided_slice %13 {offsets = [0, 2, 0, 0], sizes = [2, 1, 8, 10], strides = [1, 1, 1, 1]} : vector<2x4x8x10xf32> to vector<2x1x8x10xf32>
    %30 = vector.shape_cast %29 : vector<2x1x8x10xf32> to vector<2x8x10xf32>
    %31 = vector.extract_strided_slice %2 {offsets = [2, 0], sizes = [1, 1], strides = [1, 1]} : vector<4x1xf32> to vector<1x1xf32>
    %32 = vector.shape_cast %31 : vector<1x1xf32> to vector<1x1x1xf32>
    %33 = vector.broadcast %32 : vector<1x1x1xf32> to vector<2x8x10xf32>
    %34 = arith.mulf %30, %33 : vector<2x8x10xf32>
    %35 = arith.addf %28, %34 : vector<2x8x10xf32>
    %36 = vector.extract_strided_slice %13 {offsets = [0, 3, 0, 0], sizes = [2, 1, 8, 10], strides = [1, 1, 1, 1]} : vector<2x4x8x10xf32> to vector<2x1x8x10xf32>
    %37 = vector.shape_cast %36 : vector<2x1x8x10xf32> to vector<2x8x10xf32>
    %38 = vector.extract_strided_slice %2 {offsets = [3, 0], sizes = [1, 1], strides = [1, 1]} : vector<4x1xf32> to vector<1x1xf32>
    %39 = vector.shape_cast %38 : vector<1x1xf32> to vector<1x1x1xf32>
    %40 = vector.broadcast %39 : vector<1x1x1xf32> to vector<2x8x10xf32>
    %41 = arith.mulf %37, %40 : vector<2x8x10xf32>
    %42 = arith.addf %35, %41 : vector<2x8x10xf32>
    %43 = vector.broadcast %12 : vector<2x8x1xf32> to vector<2x8x10xf32>
    %44 = vector.broadcast %11 : vector<2x1x10xf32> to vector<2x8x10xf32>
    %45 = arith.addf %43, %44 : vector<2x8x10xf32>
    %46 = arith.addf %45, %42 : vector<2x8x10xf32>
    %cst_14 = arith.constant 0.000000e+00 : f32
    %47 = vector.broadcast %cst_14 : f32 to vector<2x8x10xf32>
    %48 = arith.cmpf oge, %46, %47 : vector<2x8x10xf32>
    %cst_15 = arith.constant 0.00999999977 : f32
    %49 = vector.broadcast %cst_15 : f32 to vector<2x8x10xf32>
    %50 = arith.mulf %49, %46 : vector<2x8x10xf32>
    %51 = arith.select %48, %46, %50 : vector<2x8x10xi1>, vector<2x8x10xf32>
    %c0_16 = arith.constant 0 : index
    %c0_17 = arith.constant 0 : index
    %c0_18 = arith.constant 0 : index
    %52 = vector.load %arg3[%c0_16, %c0_17, %c0_18] : memref<2x8x10xf32, #tpu.memory_space<vmem>>, vector<2x8x10xf32>
    %cst_19 = arith.constant dense<0xFF800000> : vector<2x8xf32>
    %53 = vector.multi_reduction <maximumf>, %52, %cst_19 [2] : vector<2x8x10xf32> to vector<2x8xf32>
    %54 = vector.shape_cast %53 : vector<2x8xf32> to vector<2x8x1xf32>
    %cst_20 = arith.constant 0.000000e+00 : f32
    %55 = vector.broadcast %cst_20 : f32 to vector<2x8x1xf32>
    %56 = arith.cmpf ole, %54, %55 : vector<2x8x1xf32>
    %cst_21 = arith.constant 0.000000e+00 : f32
    %57 = vector.broadcast %cst_21 : f32 to vector<2x8x10xf32>
    %58 = arith.cmpf ogt, %52, %57 : vector<2x8x10xf32>
    %cst_22 = arith.constant 0xFF800000 : f32
    %59 = vector.broadcast %cst_22 : f32 to vector<2x8x10xf32>
    %60 = arith.select %58, %51, %59 : vector<2x8x10xi1>, vector<2x8x10xf32>
    %cst_23 = arith.constant 0.000000e+00 : f32
    %61 = vector.shape_cast %56 : vector<2x8x1xi1> to vector<2x8x1xi1>
    %62 = vector.broadcast %61 : vector<2x8x1xi1> to vector<2x8x10xi1>
    %63 = vector.broadcast %cst_23 : f32 to vector<2x8x10xf32>
    %64 = arith.select %62, %63, %60 : vector<2x8x10xi1>, vector<2x8x10xf32>
    %cst_24 = arith.constant dense<0xFF800000> : vector<2x8xf32>
    %65 = vector.multi_reduction <maximumf>, %64, %cst_24 [2] : vector<2x8x10xf32> to vector<2x8xf32>
    %66 = vector.shape_cast %65 : vector<2x8xf32> to vector<2x8x1xf32>
    %67 = vector.broadcast %66 : vector<2x8x1xf32> to vector<2x8x10xf32>
    %68 = arith.subf %64, %67 : vector<2x8x10xf32>
    %69 = math.exp %68 : vector<2x8x10xf32>
    %cst_25 = arith.constant dense<0.000000e+00> : vector<2x8xf32>
    %70 = vector.multi_reduction <add>, %69, %cst_25 [2] : vector<2x8x10xf32> to vector<2x8xf32>
    %71 = vector.shape_cast %70 : vector<2x8xf32> to vector<2x8x1xf32>
    %72 = vector.broadcast %71 : vector<2x8x1xf32> to vector<2x8x10xf32>
    %73 = arith.divf %69, %72 : vector<2x8x10xf32>
    "tpu.trace_start"() <{level = 10 : i32, message = "bmn,bno->bmo"}> : () -> ()
    %cst_26 = arith.constant dense<0.000000e+00> : vector<2x8x16xf32>
    %74 = tpu.matmul %73, %7, %cst_26 {dimension_numbers = #tpu.dot_dimension_numbers<[2], [1], [1], [2], [0, 0, 0, 1, 1, 2], [0], [0]>} : vector<2x8x10xf32>, vector<2x10x16xf32>, vector<2x8x16xf32> -> vector<2x8x16xf32>
    "tpu.trace_stop"() : () -> ()
    %75 = tpu.iota {dimensions = array<i32: 1>} : vector<1x4xi32>
    %cst_27 = arith.constant 0.000000e+00 : f32
    %76 = vector.broadcast %cst_27 : f32 to vector<2x8x4xf32>
    %77 = vector.extract_strided_slice %13 {offsets = [0, 0, 0, 0], sizes = [2, 1, 8, 10], strides = [1, 1, 1, 1]} : vector<2x4x8x10xf32> to vector<2x1x8x10xf32>
    %78 = vector.shape_cast %77 : vector<2x1x8x10xf32> to vector<2x8x10xf32>
    %79 = arith.mulf %73, %78 : vector<2x8x10xf32>
    %cst_28 = arith.constant dense<0.000000e+00> : vector<2x8xf32>
    %80 = vector.multi_reduction <add>, %79, %cst_28 [2] : vector<2x8x10xf32> to vector<2x8xf32>
    %81 = vector.shape_cast %80 : vector<2x8xf32> to vector<2x8x1xf32>
    %c0_i32 = arith.constant 0 : i32
    %82 = vector.broadcast %c0_i32 : i32 to vector<1x4xi32>
    %83 = arith.cmpi eq, %75, %82 : vector<1x4xi32>
    %84 = arith.extui %83 : vector<1x4xi1> to vector<1x4xi32>
    %85 = arith.sitofp %84 : vector<1x4xi32> to vector<1x4xf32>
    %86 = vector.shape_cast %85 : vector<1x4xf32> to vector<1x1x4xf32>
    %87 = vector.broadcast %81 : vector<2x8x1xf32> to vector<2x8x4xf32>
    %88 = vector.broadcast %86 : vector<1x1x4xf32> to vector<2x8x4xf32>
    %89 = arith.mulf %87, %88 : vector<2x8x4xf32>
    %90 = arith.addf %76, %89 : vector<2x8x4xf32>
    %91 = vector.extract_strided_slice %13 {offsets = [0, 1, 0, 0], sizes = [2, 1, 8, 10], strides = [1, 1, 1, 1]} : vector<2x4x8x10xf32> to vector<2x1x8x10xf32>
    %92 = vector.shape_cast %91 : vector<2x1x8x10xf32> to vector<2x8x10xf32>
    %93 = arith.mulf %73, %92 : vector<2x8x10xf32>
    %cst_29 = arith.constant dense<0.000000e+00> : vector<2x8xf32>
    %94 = vector.multi_reduction <add>, %93, %cst_29 [2] : vector<2x8x10xf32> to vector<2x8xf32>
    %95 = vector.shape_cast %94 : vector<2x8xf32> to vector<2x8x1xf32>
    %c1_i32 = arith.constant 1 : i32
    %96 = vector.broadcast %c1_i32 : i32 to vector<1x4xi32>
    %97 = arith.cmpi eq, %75, %96 : vector<1x4xi32>
    %98 = arith.extui %97 : vector<1x4xi1> to vector<1x4xi32>
    %99 = arith.sitofp %98 : vector<1x4xi32> to vector<1x4xf32>
    %100 = vector.shape_cast %99 : vector<1x4xf32> to vector<1x1x4xf32>
    %101 = vector.broadcast %95 : vector<2x8x1xf32> to vector<2x8x4xf32>
    %102 = vector.broadcast %100 : vector<1x1x4xf32> to vector<2x8x4xf32>
    %103 = arith.mulf %101, %102 : vector<2x8x4xf32>
    %104 = arith.addf %90, %103 : vector<2x8x4xf32>
    %105 = vector.extract_strided_slice %13 {offsets = [0, 2, 0, 0], sizes = [2, 1, 8, 10], strides = [1, 1, 1, 1]} : vector<2x4x8x10xf32> to vector<2x1x8x10xf32>
    %106 = vector.shape_cast %105 : vector<2x1x8x10xf32> to vector<2x8x10xf32>
    %107 = arith.mulf %73, %106 : vector<2x8x10xf32>
    %cst_30 = arith.constant dense<0.000000e+00> : vector<2x8xf32>
    %108 = vector.multi_reduction <add>, %107, %cst_30 [2] : vector<2x8x10xf32> to vector<2x8xf32>
    %109 = vector.shape_cast %108 : vector<2x8xf32> to vector<2x8x1xf32>
    %c2_i32 = arith.constant 2 : i32
    %110 = vector.broadcast %c2_i32 : i32 to vector<1x4xi32>
    %111 = arith.cmpi eq, %75, %110 : vector<1x4xi32>
    %112 = arith.extui %111 : vector<1x4xi1> to vector<1x4xi32>
    %113 = arith.sitofp %112 : vector<1x4xi32> to vector<1x4xf32>
    %114 = vector.shape_cast %113 : vector<1x4xf32> to vector<1x1x4xf32>
    %115 = vector.broadcast %109 : vector<2x8x1xf32> to vector<2x8x4xf32>
    %116 = vector.broadcast %114 : vector<1x1x4xf32> to vector<2x8x4xf32>
    %117 = arith.mulf %115, %116 : vector<2x8x4xf32>
    %118 = arith.addf %104, %117 : vector<2x8x4xf32>
    %119 = vector.extract_strided_slice %13 {offsets = [0, 3, 0, 0], sizes = [2, 1, 8, 10], strides = [1, 1, 1, 1]} : vector<2x4x8x10xf32> to vector<2x1x8x10xf32>
    %120 = vector.shape_cast %119 : vector<2x1x8x10xf32> to vector<2x8x10xf32>
    %121 = arith.mulf %73, %120 : vector<2x8x10xf32>
    %cst_31 = arith.constant dense<0.000000e+00> : vector<2x8xf32>
    %122 = vector.multi_reduction <add>, %121, %cst_31 [2] : vector<2x8x10xf32> to vector<2x8xf32>
    %123 = vector.shape_cast %122 : vector<2x8xf32> to vector<2x8x1xf32>
    %c3_i32 = arith.constant 3 : i32
    %124 = vector.broadcast %c3_i32 : i32 to vector<1x4xi32>
    %125 = arith.cmpi eq, %75, %124 : vector<1x4xi32>
    %126 = arith.extui %125 : vector<1x4xi1> to vector<1x4xi32>
    %127 = arith.sitofp %126 : vector<1x4xi32> to vector<1x4xf32>
    %128 = vector.shape_cast %127 : vector<1x4xf32> to vector<1x1x4xf32>
    %129 = vector.broadcast %123 : vector<2x8x1xf32> to vector<2x8x4xf32>
    %130 = vector.broadcast %128 : vector<1x1x4xf32> to vector<2x8x4xf32>
    %131 = arith.mulf %129, %130 : vector<2x8x4xf32>
    %132 = arith.addf %118, %131 : vector<2x8x4xf32>
    %133 = vector.shape_cast %132 : vector<2x8x4xf32> to vector<16x4xf32>
    %cst_32 = arith.constant dense<0.000000e+00> : vector<16x16xf32>
    %134 = tpu.matmul %133, %1, %cst_32 {dimension_numbers = #tpu.dot_dimension_numbers<[1], [0], [0], [1], [0, 0, 1, 1], [], []>} : vector<16x4xf32>, vector<4x16xf32>, vector<16x16xf32> -> vector<16x16xf32>
    %135 = vector.shape_cast %134 : vector<16x16xf32> to vector<2x8x16xf32>
    %136 = arith.addf %74, %135 : vector<2x8x16xf32>
    %cst_33 = arith.constant 0.000000e+00 : f32
    %137 = vector.shape_cast %56 : vector<2x8x1xi1> to vector<2x8x1xi1>
    %138 = vector.broadcast %137 : vector<2x8x1xi1> to vector<2x8x16xi1>
    %139 = vector.broadcast %cst_33 : f32 to vector<2x8x16xf32>
    %140 = arith.select %138, %139, %136 : vector<2x8x16xi1>, vector<2x8x16xf32>
    %141 = arith.addf %140, %8 : vector<2x8x16xf32>
    %cst_34 = arith.constant 0.000000e+00 : f32
    %142 = vector.broadcast %cst_34 : f32 to vector<2x8x16xf32>
    %143 = arith.cmpf oge, %141, %142 : vector<2x8x16xf32>
    %144 = math.exp %141 : vector<2x8x16xf32>
    %cst_35 = arith.constant 1.000000e+00 : f32
    %145 = vector.broadcast %cst_35 : f32 to vector<2x8x16xf32>
    %146 = arith.subf %144, %145 : vector<2x8x16xf32>
    %147 = arith.select %143, %141, %146 : vector<2x8x16xi1>, vector<2x8x16xf32>
    %c0_36 = arith.constant 0 : index
    %c0_37 = arith.constant 0 : index
    %c0_38 = arith.constant 0 : index
    %148 = vector.load %arg7[%c0_36, %c0_37, %c0_38] : memref<2x8x16xf32, #tpu.memory_space<vmem>>, vector<2x8x16xf32>
    tpu.vector_store %arg7[%c0_36, %c0_37, %c0_38], %147 {strides = array<i32>} : memref<2x8x16xf32, #tpu.memory_space<vmem>>, vector<2x8x16xf32>,
    return
  }
  func.func @transform_0(%arg0: i32) -> (i32, i32, i32) {
    %c0_i32 = arith.constant 0 : i32
    %c0_i32_0 = arith.constant 0 : i32
    %c0_i32_1 = arith.constant 0 : i32
    return %arg0, %c0_i32, %c0_i32_0 : i32, i32, i32
  }
  func.func @transform_1(%arg0: i32) -> (i32, i32, i32, i32) {
    %c0_i32 = arith.constant 0 : i32
    %c0_i32_0 = arith.constant 0 : i32
    %c0_i32_1 = arith.constant 0 : i32
    %c0_i32_2 = arith.constant 0 : i32
    return %arg0, %c0_i32, %c0_i32_0, %c0_i32_1 : i32, i32, i32, i32
  }
  func.func @transform_2(%arg0: i32) -> (i32, i32, i32) {
    %c0_i32 = arith.constant 0 : i32
    %c0_i32_0 = arith.constant 0 : i32
    %c0_i32_1 = arith.constant 0 : i32
    return %arg0, %c0_i32, %c0_i32_0 : i32, i32, i32
  }
  func.func @transform_3(%arg0: i32) -> (i32, i32) {
    %c0_i32 = arith.constant 0 : i32
    %c0_i32_0 = arith.constant 0 : i32
    %c0_i32_1 = arith.constant 0 : i32
    return %c0_i32, %c0_i32_0 : i32, i32
  }
  func.func @transform_4(%arg0: i32) -> (i32, i32) {
    %c0_i32 = arith.constant 0 : i32
    %c0_i32_0 = arith.constant 0 : i32
    %c0_i32_1 = arith.constant 0 : i32
    return %c0_i32, %c0_i32_0 : i32, i32
  }
  func.func @transform_5(%arg0: i32) -> (i32, i32) {
    %c0_i32 = arith.constant 0 : i32
    %c0_i32_0 = arith.constant 0 : i32
    %c0_i32_1 = arith.constant 0 : i32
    return %c0_i32, %c0_i32_0 : i32, i32
  }
  func.func @transform_6(%arg0: i32) -> (i32, i32, i32) {
    %c0_i32 = arith.constant 0 : i32
    %c0_i32_0 = arith.constant 0 : i32
    %c0_i32_1 = arith.constant 0 : i32
    return %arg0, %c0_i32, %c0_i32_0 : i32, i32, i32
  }
}

</mosaic_0001>

<llo_original>
// kernel: tpu_custom_call.1
$region0: #{tpu_custom_call.1}
  #allocation0 [shape = 'u32[]', space=smem, size = 0x4, offset = 0x4, fixed_abs, tag = 'smem constant byte address 0x4 - core index']
  #allocation1 [shape = 'u32[72,128]{1,0:T(1,128)}', space=vmem, size = 0x9000, scoped, tag = 'internal scratch']
  %s0 = inlined_call_operand.vmem [shape: f32[2,18,11], index: 0, kind: input, shape index: {}]
  %s1 = inlined_call_operand.vmem [shape: f32[2,4,8,10], index: 1, kind: input, shape index: {}]
  %s2 = inlined_call_operand.hbm [shape: f32[2,8,10], index: 2, kind: input, shape index: {}]
  %s3 = inlined_call_operand.hbm [shape: f32[11,17], index: 3, kind: input, shape index: {}]
  %s4 = inlined_call_operand.vmem [shape: f32[4,16], index: 4, kind: input, shape index: {}]
  %s5 = inlined_call_operand.vmem [shape: f32[4,1], index: 5, kind: input, shape index: {}]
  %s6 = inlined_call_operand.hbm [shape: f32[2,8,16], index: 6, kind: output, shape index: {}]
  %s7 = sld [smem:[#allocation0]]
  $region42: #{tpu_custom_call.1} parent=0
    _
  %s9 = ssub.s32 1, %s7
  %s10 = scalar_select 0, %s9, %s7
  $region1: #{tpu_custom_call.1} parent=0
    #allocation2 [shape = 'u8[8192]{0}', space=vmem, size = 0x2000, scoped, tag = 'input window, operand 2, single buffered']
    #allocation3 [shape = 's32[1]{0}', space=sflag, size = 0x4, scoped, tag = 'scoped memory for tpu_custom_call.1']
    #allocation4 [shape = 's32[1]{0}', space=sflag, size = 0x4, scoped, tag = 'scoped memory for tpu_custom_call.1']
    #allocation5 [shape = 'u8[8192]{0}', space=vmem, size = 0x2000, scoped, tag = 'input window, operand 3, single buffered']
    #allocation6 [shape = 's32[1]{0}', space=sflag, size = 0x4, scoped, tag = 'scoped memory for tpu_custom_call.1']
    #allocation7 [shape = 'u8[8192]{0}', space=vmem, size = 0x2000, scoped, tag = 'output window, operand 0, single buffered']
    %11 = vsyncpa [#allocation3], 0
    %12 = vsyncpa [#allocation6], 0
    %13 = vsyncpa [#allocation4], 0
    // Predicated region
    $region2: #{tpu_custom_call.1} parent=1 // pred_check
      _
    $region3: #{tpu_custom_call.1} parent=1 // pred_check_branch
      %15 = sbr.rel (0) target = $region5
    $region4: #{tpu_custom_call.1} parent=1 // pred_region
      _
    $region5: #{tpu_custom_call.1} parent=1 // pred_fallthru
      _
    // Predicated region
    $region6: #{tpu_custom_call.1} parent=1 // pred_check
      _
    $region7: #{tpu_custom_call.1} parent=1 // pred_check_branch
      %17 = sbr.rel (0) target = $region9
    $region8: #{tpu_custom_call.1} parent=1 // pred_region
      _
    $region9: #{tpu_custom_call.1} parent=1 // pred_fallthru
      _
    // Predicated region
    $region10: #{tpu_custom_call.1} parent=1 // pred_check
      _
    $region11: #{tpu_custom_call.1} parent=1 // pred_check_branch
      %19 = sbr.rel (0) target = $region13
    $region12: #{tpu_custom_call.1} parent=1 // pred_region
      %21 = vsyncadd [#allocation3], 0
      %s22 = sshll.u32 %s2, 4
      %s23 = int_to_ptr.hbm [resolvable:$true] %s22
      %s24 = sshll.u32 [#allocation2], 4
      %s25 = int_to_ptr.vmem [resolvable:$true] %s24
      %30 = dma.hbm_to_vmem [thread:$0]  %s23, 256, %s25, [#allocation3], 128, 128, 8
    $region13: #{tpu_custom_call.1} parent=1 // pred_fallthru
      _
    // Predicated region
    $region14: #{tpu_custom_call.1} parent=1 // pred_check
      _
    $region15: #{tpu_custom_call.1} parent=1 // pred_check_branch
      %32 = sbr.rel (0) target = $region17
    $region16: #{tpu_custom_call.1} parent=1 // pred_region
      %34 = vsyncadd [#allocation6], 0
      %s35 = sshll.u32 %s3, 4
      %s36 = int_to_ptr.hbm [resolvable:$true] %s35
      %s37 = sshll.u32 [#allocation5], 4
      %s38 = int_to_ptr.vmem [resolvable:$true] %s37
      %43 = dma.hbm_to_vmem [thread:$0]  %s36, 256, %s38, [#allocation6], 128, 128, 8
    $region17: #{tpu_custom_call.1} parent=1 // pred_fallthru
      _
    // Predicated region
    $region18: #{tpu_custom_call.1} parent=1 // pred_check
      _
    $region19: #{tpu_custom_call.1} parent=1 // pred_check_branch
      %45 = sbr.rel (0) target = $region21
    $region20: #{tpu_custom_call.1} parent=1 // pred_region
      _
    $region21: #{tpu_custom_call.1} parent=1 // pred_fallthru
      _
    // Predicated region
    $region22: #{tpu_custom_call.1} parent=1 // pred_check
      _
    $region23: #{tpu_custom_call.1} parent=1 // pred_check_branch
      %47 = sbr.rel (0) target = $region25
    $region24: #{tpu_custom_call.1} parent=1 // pred_region
      _
    $region25: #{tpu_custom_call.1} parent=1 // pred_fallthru
      _
    // Predicated region
    $region26: #{tpu_custom_call.1} parent=1 // pred_check
      _
    $region27: #{tpu_custom_call.1} parent=1 // pred_check_branch
      %49 = sbr.rel (0) target = $region29
    $region28: #{tpu_custom_call.1} parent=1 // pred_region
      %51 = dma.done [#allocation3], 256
    $region29: #{tpu_custom_call.1} parent=1 // pred_fallthru
      _
    // Predicated region
    $region30: #{tpu_custom_call.1} parent=1 // pred_check
      _
    $region31: #{tpu_custom_call.1} parent=1 // pred_check_branch
      %53 = sbr.rel (0) target = $region33
    $region32: #{tpu_custom_call.1} parent=1 // pred_region
      %55 = dma.done [#allocation6], 256
    $region33: #{tpu_custom_call.1} parent=1 // pred_fallthru
      _
    %v56 = vld [vmem:[#allocation5] sm:$0xff]
    %v57 = vld [vmem:[#allocation5 + $0x8] sm:$0x7]
    %v58 = vld [vmem:[%s4] sm:$0xf]
    %v59 = vld [vmem:[%s5] sm:$0xf]
    %v60 = vld [vmem:[%s0] sm:$0xff]
    %v61 = vld [vmem:[%s0 + $0x8] sm:$0xff]
    %v62 = vld [vmem:[%s0 + $0x10] sm:$0x3]
    %v63 = vld [vmem:[%s0 + $0x18] sm:$0xff]
    %v64 = vld [vmem:[%s0 + $0x20] sm:$0xff]
    %v65 = vld [vmem:[%s0 + $0x28] sm:$0x3]
    %v72 = vrot.slane %v60, 2
    %v73 = vrot.slane %v60, 4
    %v74 = vrot.slane %v60, 6
    %v75 = vrot.slane %v61, 2
    %v76 = vrot.slane %v61, 4
    %v77 = vrot.slane %v61, 6
    %v78 = vrot.slane %v63, 2
    %v79 = vrot.slane %v63, 4
    %v80 = vrot.slane %v63, 6
    %v81 = vrot.slane %v64, 2
    %v82 = vrot.slane %v64, 4
    %v83 = vrot.slane %v64, 6
    %84 = vst [vmem:[#allocation1] ss:$4 sm:$0xff] %v60
    %s85 = scalar_lea.vmem [#allocation1], 1
    %86 = vst [vmem:[%s85] ss:$4 sm:$0xff] %v72
    %s87 = scalar_lea.vmem [#allocation1], 2
    %88 = vst [vmem:[%s87] ss:$4 sm:$0xff] %v73
    %s89 = scalar_lea.vmem [#allocation1], 3
    %90 = vst [vmem:[%s89] ss:$4 sm:$0xff] %v74
    %s91 = scalar_lea.vmem [#allocation1], 32
    %92 = vst [vmem:[%s91] ss:$4 sm:$0xff] %v61
    %s93 = scalar_lea.vmem [#allocation1], 33
    %94 = vst [vmem:[%s93] ss:$4 sm:$0xff] %v75
    %s95 = scalar_lea.vmem [#allocation1], 34
    %96 = vst [vmem:[%s95] ss:$4 sm:$0xff] %v76
    %s97 = scalar_lea.vmem [#allocation1], 35
    %98 = vst [vmem:[%s97] ss:$4 sm:$0xff] %v77
    %v99 = vld.sshfl [vmem:[#allocation1] sm:$0xff pattern:$0x73625140]
    %v100 = vld.sshfl [vmem:[#allocation1 + $0x20] sm:$0xff pattern:$0x73625140]
    %101 = vst [vmem:[#allocation1] ss:$4 sm:$0xff] %v62
    %102 = vst [vmem:[%s85] ss:$4 sm:$0xff] %v63
    %103 = vst [vmem:[%s87] ss:$4 sm:$0xff] %v78
    %104 = vst [vmem:[%s89] ss:$4 sm:$0xff] %v79
    %105 = vst [vmem:[%s91] ss:$4 sm:$0xff] %v80
    %106 = vst [vmem:[%s93] ss:$4 sm:$0xff] %v64
    %107 = vst [vmem:[%s95] ss:$4 sm:$0xff] %v81
    %108 = vst [vmem:[%s97] ss:$4 sm:$0xff] %v82
    %v109 = vld.sshfl [vmem:[#allocation1] sm:$0xff pattern:$0x73625140]
    %v110 = vld.sshfl [vmem:[#allocation1 + $0x20] sm:$0xff pattern:$0x73625140]
    %111 = vst [vmem:[#allocation1] ss:$4 sm:$0xff] %v83
    %112 = vst [vmem:[%s85] ss:$4 sm:$0xff] %v65
    %v113 = vld.sshfl [vmem:[#allocation1] sm:$0xff pattern:$0x73625140]
    %vm114 = vcmask 89088
    %v115 = vsel %vm114, %v99, 0
    %v117 = vsel %vm114, %v100, 0
    %v119 = vsel %vm114, %v109, 0
    %v121 = vsel %vm114, %v110, 0
    %v123 = vsel %vm114, %v113, 0
    %vm125 = vcmask 1042432
    %v127 = vsel %vm125, %v57, 0
    %129 = vmatpush.msra.mxu0 0.0
    %130 = vmatpush.msra.mxu0 0.0
    %131 = vmatpush.msra.mxu0 0.0
    %132 = vmatpush.msra.mxu0 0.0
    %133 = vmatpush.msra.mxu0 0.0
    %134 = vmatpush.msra.mxu0 0.0
    %135 = vmatpush.msra.mxu0 0.0
    %136 = vmatpush.msra.mxu0 0.0
    %137 = vmatpush.msra.mxu0 0.0
    %138 = vmatpush.msra.mxu0 0.0
    %139 = vmatpush.msra.mxu0 0.0
    %140 = vmatpush.msra.mxu0 0.0
    %141 = vmatpush.msra.mxu0 0.0
    %142 = vmatpush.msra.mxu0 0.0
    %143 = vmatpush.msra.mxu0 %v127
    %144 = vmatpush.msra.mxu0 %v56
    %145 = vmatmul.f32.gmra.mxu0 %v115
    %v146 = vpop.f32.mrf.mxu0
    %v147 = vadd.f32 0.0, %v146
    %148 = vmatmul.f32.gmra.mxu0 %v117
    %v149 = vpop.f32.mrf.mxu0
    %v150 = vadd.f32 0.0, %v149
    %151 = vmatmul.f32.gmra.mxu0 %v119
    %v152 = vpop.f32.mrf.mxu0
    %v153 = vadd.f32 0.0, %v152
    %154 = vmatmul.f32.gmra.mxu0 %v121
    %v155 = vpop.f32.mrf.mxu0
    %v156 = vadd.f32 0.0, %v155
    %157 = vmatmul.f32.gmra.mxu0 %v123
    %v158 = vpop.f32.mrf.mxu0
    %v159 = vadd.f32 0.0, %v158
    %160 = vdwg.mxu0
    %v166 = vrot.slane %v147, 2
    %v167 = vrot.slane %v147, 4
    %v168 = vrot.slane %v147, 6
    %v169 = vrot.slane %v150, 2
    %v170 = vrot.slane %v150, 4
    %v171 = vrot.slane %v150, 6
    %v172 = vrot.slane %v153, 2
    %v173 = vrot.slane %v153, 4
    %v174 = vrot.slane %v153, 6
    %v175 = vrot.slane %v156, 2
    %v176 = vrot.slane %v156, 4
    %v177 = vrot.slane %v156, 6
    %v178 = vrot.slane %v159, 2
    %v186 = vadd.f32 %v147, 0.0
    %v187 = vadd.f32 %v166, 0.0
    %v188 = vadd.f32 %v167, 0.0
    %v189 = vadd.f32 %v168, 0.0
    %v190 = vadd.f32 %v150, 0.0
    %v191 = vadd.f32 %v172, 0.0
    %v192 = vadd.f32 %v173, 0.0
    %v193 = vadd.f32 %v174, 0.0
    %v194 = vadd.f32 %v156, 0.0
    %v195 = vadd.f32 %v175, 0.0
    %v196 = vld [vmem:[%s1] sm:$0xff]
    %v197 = vld [vmem:[%s1 + $0x8] sm:$0xff]
    %v198 = vld [vmem:[%s1 + $0x10] sm:$0xff]
    %v199 = vld [vmem:[%s1 + $0x18] sm:$0xff]
    %v200 = vld [vmem:[%s1 + $0x20] sm:$0xff]
    %v201 = vld [vmem:[%s1 + $0x28] sm:$0xff]
    %v202 = vld [vmem:[%s1 + $0x30] sm:$0xff]
    %v203 = vld [vmem:[%s1 + $0x38] sm:$0xff]
    %s205 = vtos %v59
    %v206 = vstv %s205
    %v208 = vmul.f32 %v196, %v206
    %v209 = vmul.f32 %v200, %v206
    %v210 = vadd.f32 %v208, 0.0
    %v211 = vadd.f32 %v209, 0.0
    %v212 = vrot.slane %v59, 1
    %s213 = vtos %v212
    %v214 = vstv %s213
    %v216 = vmul.f32 %v197, %v214
    %v217 = vmul.f32 %v201, %v214
    %v218 = vadd.f32 %v210, %v216
    %v219 = vadd.f32 %v211, %v217
    %v220 = vrot.slane %v59, 2
    %s221 = vtos %v220
    %v222 = vstv %s221
    %v224 = vmul.f32 %v198, %v222
    %v225 = vmul.f32 %v202, %v222
    %v226 = vadd.f32 %v218, %v224
    %v227 = vadd.f32 %v219, %v225
    %v228 = vrot.slane %v59, 3
    %s229 = vtos %v228
    %v230 = vstv %s229
    %v232 = vmul.f32 %v199, %v230
    %v233 = vmul.f32 %v203, %v230
    %v234 = vadd.f32 %v226, %v232
    %v235 = vadd.f32 %v227, %v233
    %236 = vset.pattern.permute.xlu0 16
    %237 = vperm.xlu0 %236, %v169
    %v238 = vpop.permute.xlu0 %237
    %v241 = vunpack.c.l.s4 269488144
    %v242 = vunpack.c.0.s8 %v241
    %v243 = vperm.slane %v238, %v242
    %244 = vset.pattern.permute.xlu0 16
    %245 = vperm.xlu0 %244, %v170
    %v246 = vpop.permute.xlu0 %245
    %v249 = vunpack.c.l.s4 269488144
    %v250 = vunpack.c.0.s8 %v249
    %v251 = vperm.slane %v246, %v250
    %252 = vset.pattern.permute.xlu0 16
    %253 = vperm.xlu0 %252, %v171
    %v254 = vpop.permute.xlu0 %253
    %v257 = vunpack.c.l.s4 269488144
    %v258 = vunpack.c.0.s8 %v257
    %v259 = vperm.slane %v254, %v258
    %260 = vset.pattern.permute.xlu0 16
    %261 = vperm.xlu0 %260, %v153
    %v262 = vpop.permute.xlu0 %261
    %v265 = vunpack.c.l.s4 269488144
    %v266 = vunpack.c.0.s8 %v265
    %v267 = vperm.slane %v262, %v266
    %268 = vset.pattern.permute.xlu0 16
    %269 = vperm.xlu0 %268, %v176
    %v270 = vpop.permute.xlu0 %269
    %v273 = vunpack.c.l.s4 269488144
    %v274 = vunpack.c.0.s8 %v273
    %v275 = vperm.slane %v270, %v274
    %276 = vset.pattern.permute.xlu0 16
    %277 = vperm.xlu0 %276, %v177
    %v278 = vpop.permute.xlu0 %277
    %v281 = vunpack.c.l.s4 269488144
    %v282 = vunpack.c.0.s8 %v281
    %v283 = vperm.slane %v278, %v282
    %284 = vset.pattern.permute.xlu0 16
    %285 = vperm.xlu0 %284, %v159
    %v286 = vpop.permute.xlu0 %285
    %v289 = vunpack.c.l.s4 269488144
    %v290 = vunpack.c.0.s8 %v289
    %v291 = vperm.slane %v286, %v290
    %292 = vset.pattern.permute.xlu0 16
    %293 = vperm.xlu0 %292, %v178
    %v294 = vpop.permute.xlu0 %293
    %v297 = vunpack.c.l.s4 269488144
    %v298 = vunpack.c.0.s8 %v297
    %v299 = vperm.slane %v294, %v298
    %310 = vst [vmem:[#allocation1] ss:$4 sm:$0xff] %v186
    %s311 = scalar_lea.vmem [#allocation1], 1
    %312 = vst [vmem:[%s311] ss:$4 sm:$0xff] %v187
    %s313 = scalar_lea.vmem [#allocation1], 2
    %314 = vst [vmem:[%s313] ss:$4 sm:$0xff] %v188
    %s315 = scalar_lea.vmem [#allocation1], 3
    %316 = vst [vmem:[%s315] ss:$4 sm:$0xff] %v189
    %s317 = scalar_lea.vmem [#allocation1], 32
    %318 = vst [vmem:[%s317] ss:$4 sm:$0xff] %v190
    %v319 = vld.sshfl [vmem:[#allocation1] sm:$0xff pattern:$0x73625140]
    %v320 = vld.sshfl [vmem:[#allocation1 + $0x20] sm:$0xff pattern:$0x73625140]
    %321 = vst [vmem:[#allocation1] ss:$4 sm:$0xff] %v186
    %322 = vst [vmem:[%s311] ss:$4 sm:$0xff] %v187
    %323 = vst [vmem:[%s313] ss:$4 sm:$0xff] %v188
    %324 = vst [vmem:[%s315] ss:$4 sm:$0xff] %v189
    %325 = vst [vmem:[%s317] ss:$4 sm:$0xff] %v190
    %v326 = vld.sshfl [vmem:[#allocation1] sm:$0xff pattern:$0x73625140]
    %v327 = vld.sshfl [vmem:[#allocation1 + $0x20] sm:$0xff pattern:$0x73625140]
    %328 = vst [vmem:[#allocation1] ss:$4 sm:$0xff] %v186
    %329 = vst [vmem:[%s311] ss:$4 sm:$0xff] %v187
    %330 = vst [vmem:[%s313] ss:$4 sm:$0xff] %v188
    %331 = vst [vmem:[%s315] ss:$4 sm:$0xff] %v189
    %332 = vst [vmem:[%s317] ss:$4 sm:$0xff] %v190
    %v333 = vld.sshfl [vmem:[#allocation1] sm:$0xff pattern:$0x73625140]
    %v334 = vld.sshfl [vmem:[#allocation1 + $0x20] sm:$0xff pattern:$0x73625140]
    %335 = vst [vmem:[#allocation1] ss:$4 sm:$0xff] %v186
    %336 = vst [vmem:[%s311] ss:$4 sm:$0xff] %v187
    %337 = vst [vmem:[%s313] ss:$4 sm:$0xff] %v188
    %338 = vst [vmem:[%s315] ss:$4 sm:$0xff] %v189
    %339 = vst [vmem:[%s317] ss:$4 sm:$0xff] %v190
    %v340 = vld.sshfl [vmem:[#allocation1] sm:$0xff pattern:$0x73625140]
    %v341 = vld.sshfl [vmem:[#allocation1 + $0x20] sm:$0xff pattern:$0x73625140]
    %342 = vst [vmem:[#allocation1] ss:$4 sm:$0xff] %v186
    %343 = vst [vmem:[%s311] ss:$4 sm:$0xff] %v187
    %344 = vst [vmem:[%s313] ss:$4 sm:$0xff] %v188
    %345 = vst [vmem:[%s315] ss:$4 sm:$0xff] %v189
    %346 = vst [vmem:[%s317] ss:$4 sm:$0xff] %v190
    %v347 = vld.sshfl [vmem:[#allocation1] sm:$0xff pattern:$0x73625140]
    %v348 = vld.sshfl [vmem:[#allocation1 + $0x20] sm:$0xff pattern:$0x73625140]
    %349 = vst [vmem:[#allocation1] ss:$4 sm:$0xff] %v186
    %350 = vst [vmem:[%s311] ss:$4 sm:$0xff] %v187
    %351 = vst [vmem:[%s313] ss:$4 sm:$0xff] %v188
    %352 = vst [vmem:[%s315] ss:$4 sm:$0xff] %v189
    %353 = vst [vmem:[%s317] ss:$4 sm:$0xff] %v190
    %v354 = vld.sshfl [vmem:[#allocation1] sm:$0xff pattern:$0x73625140]
    %v355 = vld.sshfl [vmem:[#allocation1 + $0x20] sm:$0xff pattern:$0x73625140]
    %356 = vst [vmem:[#allocation1] ss:$4 sm:$0xff] %v186
    %357 = vst [vmem:[%s311] ss:$4 sm:$0xff] %v187
    %358 = vst [vmem:[%s313] ss:$4 sm:$0xff] %v188
    %359 = vst [vmem:[%s315] ss:$4 sm:$0xff] %v189
    %360 = vst [vmem:[%s317] ss:$4 sm:$0xff] %v190
    %v361 = vld.sshfl [vmem:[#allocation1] sm:$0xff pattern:$0x73625140]
    %v362 = vld.sshfl [vmem:[#allocation1 + $0x20] sm:$0xff pattern:$0x73625140]
    %363 = vst [vmem:[#allocation1] ss:$4 sm:$0xff] %v186
    %364 = vst [vmem:[%s311] ss:$4 sm:$0xff] %v187
    %365 = vst [vmem:[%s313] ss:$4 sm:$0xff] %v188
    %366 = vst [vmem:[%s315] ss:$4 sm:$0xff] %v189
    %367 = vst [vmem:[%s317] ss:$4 sm:$0xff] %v190
    %v368 = vld.sshfl [vmem:[#allocation1] sm:$0xff pattern:$0x73625140]
    %v369 = vld.sshfl [vmem:[#allocation1 + $0x20] sm:$0xff pattern:$0x73625140]
    %370 = vst [vmem:[#allocation1] ss:$4 sm:$0xff] %v191
    %371 = vst [vmem:[%s311] ss:$4 sm:$0xff] %v192
    %372 = vst [vmem:[%s313] ss:$4 sm:$0xff] %v193
    %373 = vst [vmem:[%s315] ss:$4 sm:$0xff] %v194
    %374 = vst [vmem:[%s317] ss:$4 sm:$0xff] %v195
    %v375 = vld.sshfl [vmem:[#allocation1] sm:$0xff pattern:$0x73625140]
    %v376 = vld.sshfl [vmem:[#allocation1 + $0x20] sm:$0xff pattern:$0x73625140]
    %377 = vst [vmem:[#allocation1] ss:$4 sm:$0xff] %v191
    %378 = vst [vmem:[%s311] ss:$4 sm:$0xff] %v192
    %379 = vst [vmem:[%s313] ss:$4 sm:$0xff] %v193
    %380 = vst [vmem:[%s315] ss:$4 sm:$0xff] %v194
    %381 = vst [vmem:[%s317] ss:$4 sm:$0xff] %v195
    %v382 = vld.sshfl [vmem:[#allocation1] sm:$0xff pattern:$0x73625140]
    %v383 = vld.sshfl [vmem:[#allocation1 + $0x20] sm:$0xff pattern:$0x73625140]
    %384 = vst [vmem:[#allocation1] ss:$4 sm:$0xff] %v191
    %385 = vst [vmem:[%s311] ss:$4 sm:$0xff] %v192
    %386 = vst [vmem:[%s313] ss:$4 sm:$0xff] %v193
    %387 = vst [vmem:[%s315] ss:$4 sm:$0xff] %v194
    %388 = vst [vmem:[%s317] ss:$4 sm:$0xff] %v195
    %v389 = vld.sshfl [vmem:[#allocation1] sm:$0xff pattern:$0x73625140]
    %v390 = vld.sshfl [vmem:[#allocation1 + $0x20] sm:$0xff pattern:$0x73625140]
    %391 = vst [vmem:[#allocation1] ss:$4 sm:$0xff] %v191
    %392 = vst [vmem:[%s311] ss:$4 sm:$0xff] %v192
    %393 = vst [vmem:[%s313] ss:$4 sm:$0xff] %v193
    %394 = vst [vmem:[%s315] ss:$4 sm:$0xff] %v194
    %395 = vst [vmem:[%s317] ss:$4 sm:$0xff] %v195
    %v396 = vld.sshfl [vmem:[#allocation1] sm:$0xff pattern:$0x73625140]
    %v397 = vld.sshfl [vmem:[#allocation1 + $0x20] sm:$0xff pattern:$0x73625140]
    %398 = vst [vmem:[#allocation1] ss:$4 sm:$0xff] %v191
    %399 = vst [vmem:[%s311] ss:$4 sm:$0xff] %v192
    %400 = vst [vmem:[%s313] ss:$4 sm:$0xff] %v193
    %401 = vst [vmem:[%s315] ss:$4 sm:$0xff] %v194
    %402 = vst [vmem:[%s317] ss:$4 sm:$0xff] %v195
    %v403 = vld.sshfl [vmem:[#allocation1] sm:$0xff pattern:$0x73625140]
    %v404 = vld.sshfl [vmem:[#allocation1 + $0x20] sm:$0xff pattern:$0x73625140]
    %405 = vst [vmem:[#allocation1] ss:$4 sm:$0xff] %v191
    %406 = vst [vmem:[%s311] ss:$4 sm:$0xff] %v192
    %407 = vst [vmem:[%s313] ss:$4 sm:$0xff] %v193
    %408 = vst [vmem:[%s315] ss:$4 sm:$0xff] %v194
    %409 = vst [vmem:[%s317] ss:$4 sm:$0xff] %v195
    %v410 = vld.sshfl [vmem:[#allocation1] sm:$0xff pattern:$0x73625140]
    %v411 = vld.sshfl [vmem:[#allocation1 + $0x20] sm:$0xff pattern:$0x73625140]
    %412 = vst [vmem:[#allocation1] ss:$4 sm:$0xff] %v191
    %413 = vst [vmem:[%s311] ss:$4 sm:$0xff] %v192
    %414 = vst [vmem:[%s313] ss:$4 sm:$0xff] %v193
    %415 = vst [vmem:[%s315] ss:$4 sm:$0xff] %v194
    %416 = vst [vmem:[%s317] ss:$4 sm:$0xff] %v195
    %v417 = vld.sshfl [vmem:[#allocation1] sm:$0xff pattern:$0x73625140]
    %v418 = vld.sshfl [vmem:[#allocation1 + $0x20] sm:$0xff pattern:$0x73625140]
    %419 = vst [vmem:[#allocation1] ss:$4 sm:$0xff] %v191
    %420 = vst [vmem:[%s311] ss:$4 sm:$0xff] %v192
    %421 = vst [vmem:[%s313] ss:$4 sm:$0xff] %v193
    %422 = vst [vmem:[%s315] ss:$4 sm:$0xff] %v194
    %423 = vst [vmem:[%s317] ss:$4 sm:$0xff] %v195
    %v424 = vld.sshfl [vmem:[#allocation1] sm:$0xff pattern:$0x73625140]
    %v425 = vld.sshfl [vmem:[#allocation1 + $0x20] sm:$0xff pattern:$0x73625140]
    %426 = vset.pattern.permute.xlu0 16
    %427 = vperm.xlu0 %426, %v319
    %v428 = vpop.permute.xlu0 %427
    %429 = vset.pattern.permute.xlu0 16
    %430 = vperm.xlu0 %429, %v320
    %v431 = vpop.permute.xlu0 %430
    %432 = vset.pattern.permute.xlu0 16
    %433 = vperm.xlu0 %432, %v326
    %v434 = vpop.permute.xlu0 %433
    %435 = vset.pattern.permute.xlu0 16
    %436 = vperm.xlu0 %435, %v327
    %v437 = vpop.permute.xlu0 %436
    %438 = vset.pattern.permute.xlu0 16
    %439 = vperm.xlu0 %438, %v333
    %v440 = vpop.permute.xlu0 %439
    %441 = vset.pattern.permute.xlu0 16
    %442 = vperm.xlu0 %441, %v334
    %v443 = vpop.permute.xlu0 %442
    %444 = vset.pattern.permute.xlu0 16
    %445 = vperm.xlu0 %444, %v340
    %v446 = vpop.permute.xlu0 %445
    %447 = vset.pattern.permute.xlu0 16
    %448 = vperm.xlu0 %447, %v341
    %v449 = vpop.permute.xlu0 %448
    %450 = vset.pattern.permute.xlu0 16
    %451 = vperm.xlu0 %450, %v347
    %v452 = vpop.permute.xlu0 %451
    %453 = vset.pattern.permute.xlu0 16
    %454 = vperm.xlu0 %453, %v348
    %v455 = vpop.permute.xlu0 %454
    %456 = vset.pattern.permute.xlu0 16
    %457 = vperm.xlu0 %456, %v354
    %v458 = vpop.permute.xlu0 %457
    %459 = vset.pattern.permute.xlu0 16
    %460 = vperm.xlu0 %459, %v355
    %v461 = vpop.permute.xlu0 %460
    %462 = vset.pattern.permute.xlu0 16
    %463 = vperm.xlu0 %462, %v361
    %v464 = vpop.permute.xlu0 %463
    %465 = vset.pattern.permute.xlu0 16
    %466 = vperm.xlu0 %465, %v362
    %v467 = vpop.permute.xlu0 %466
    %468 = vset.pattern.permute.xlu0 16
    %469 = vperm.xlu0 %468, %v368
    %v470 = vpop.permute.xlu0 %469
    %471 = vset.pattern.permute.xlu0 16
    %472 = vperm.xlu0 %471, %v369
    %v473 = vpop.permute.xlu0 %472
    %474 = vset.pattern.permute.xlu0 16
    %475 = vperm.xlu0 %474, %v375
    %v476 = vpop.permute.xlu0 %475
    %477 = vset.pattern.permute.xlu0 16
    %478 = vperm.xlu0 %477, %v376
    %v479 = vpop.permute.xlu0 %478
    %480 = vset.pattern.permute.xlu0 16
    %481 = vperm.xlu0 %480, %v382
    %v482 = vpop.permute.xlu0 %481
    %483 = vset.pattern.permute.xlu0 16
    %484 = vperm.xlu0 %483, %v383
    %v485 = vpop.permute.xlu0 %484
    %486 = vset.pattern.permute.xlu0 16
    %487 = vperm.xlu0 %486, %v389
    %v488 = vpop.permute.xlu0 %487
    %489 = vset.pattern.permute.xlu0 16
    %490 = vperm.xlu0 %489, %v390
    %v491 = vpop.permute.xlu0 %490
    %492 = vset.pattern.permute.xlu0 16
    %493 = vperm.xlu0 %492, %v396
    %v494 = vpop.permute.xlu0 %493
    %495 = vset.pattern.permute.xlu0 16
    %496 = vperm.xlu0 %495, %v397
    %v497 = vpop.permute.xlu0 %496
    %498 = vset.pattern.permute.xlu0 16
    %499 = vperm.xlu0 %498, %v403
    %v500 = vpop.permute.xlu0 %499
    %501 = vset.pattern.permute.xlu0 16
    %502 = vperm.xlu0 %501, %v404
    %v503 = vpop.permute.xlu0 %502
    %504 = vset.pattern.permute.xlu0 16
    %505 = vperm.xlu0 %504, %v410
    %v506 = vpop.permute.xlu0 %505
    %507 = vset.pattern.permute.xlu0 16
    %508 = vperm.xlu0 %507, %v411
    %v509 = vpop.permute.xlu0 %508
    %510 = vset.pattern.permute.xlu0 16
    %511 = vperm.xlu0 %510, %v417
    %v512 = vpop.permute.xlu0 %511
    %513 = vset.pattern.permute.xlu0 16
    %514 = vperm.xlu0 %513, %v418
    %v515 = vpop.permute.xlu0 %514
    %516 = vset.pattern.permute.xlu0 16
    %517 = vperm.xlu0 %516, %v424
    %v518 = vpop.permute.xlu0 %517
    %519 = vset.pattern.permute.xlu0 16
    %520 = vperm.xlu0 %519, %v425
    %v521 = vpop.permute.xlu0 %520
    %v522 = vlaneseq
    %v523 = vand.u32 %v522, 127
    %v524 = vperm.slane %v428, %v523
    %v525 = vadd.s32 %v523, 4294967288
    %v526 = vperm.slane %v431, %v525
    %vm527 = vcmask 130112
    %v528 = vsel %vm527, %v526, %v524
    %v529 = vperm.slane %v434, %v523
    %v530 = vperm.slane %v437, %v525
    %v531 = vsel %vm527, %v530, %v529
    %v532 = vperm.slane %v440, %v523
    %v533 = vperm.slane %v443, %v525
    %v534 = vsel %vm527, %v533, %v532
    %v535 = vperm.slane %v446, %v523
    %v536 = vperm.slane %v449, %v525
    %v537 = vsel %vm527, %v536, %v535
    %v538 = vperm.slane %v452, %v523
    %v539 = vperm.slane %v455, %v525
    %v540 = vsel %vm527, %v539, %v538
    %v541 = vperm.slane %v458, %v523
    %v542 = vperm.slane %v461, %v525
    %v543 = vsel %vm527, %v542, %v541
    %v544 = vperm.slane %v464, %v523
    %v545 = vperm.slane %v467, %v525
    %v546 = vsel %vm527, %v545, %v544
    %v547 = vperm.slane %v470, %v523
    %v548 = vperm.slane %v473, %v525
    %v549 = vsel %vm527, %v548, %v547
    %v550 = vperm.slane %v476, %v523
    %v551 = vperm.slane %v479, %v525
    %v552 = vsel %vm527, %v551, %v550
    %v553 = vperm.slane %v482, %v523
    %v554 = vperm.slane %v485, %v525
    %v555 = vsel %vm527, %v554, %v553
    %v556 = vperm.slane %v488, %v523
    %v557 = vperm.slane %v491, %v525
    %v558 = vsel %vm527, %v557, %v556
    %v559 = vperm.slane %v494, %v523
    %v560 = vperm.slane %v497, %v525
    %v561 = vsel %vm527, %v560, %v559
    %v562 = vperm.slane %v500, %v523
    %v563 = vperm.slane %v503, %v525
    %v564 = vsel %vm527, %v563, %v562
    %v565 = vperm.slane %v506, %v523
    %v566 = vperm.slane %v509, %v525
    %v567 = vsel %vm527, %v566, %v565
    %v568 = vperm.slane %v512, %v523
    %v569 = vperm.slane %v515, %v525
    %v570 = vsel %vm527, %v569, %v568
    %v571 = vperm.slane %v518, %v523
    %v572 = vperm.slane %v521, %v525
    %v573 = vsel %vm527, %v572, %v571
    %vm574 = vcmask 1041409
    %v575 = vsel %vm574, %v531, %v528
    %vm576 = vcmask 1042434
    %v577 = vsel %vm576, %v534, %v575
    %vm578 = vcmask 1043459
    %v579 = vsel %vm578, %v537, %v577
    %vm580 = vcmask 1044484
    %v581 = vsel %vm580, %v540, %v579
    %vm582 = vcmask 1045509
    %v583 = vsel %vm582, %v543, %v581
    %vm584 = vcmask 1046534
    %v585 = vsel %vm584, %v546, %v583
    %vm586 = vcmask 1047559
    %v587 = vsel %vm586, %v549, %v585
    %v588 = vsel %vm574, %v555, %v552
    %v589 = vsel %vm576, %v558, %v588
    %v590 = vsel %vm578, %v561, %v589
    %v591 = vsel %vm580, %v564, %v590
    %v592 = vsel %vm582, %v567, %v591
    %v593 = vsel %vm584, %v570, %v592
    %v594 = vsel %vm586, %v573, %v593
    %v595 = vrot.slane %v587, 2
    %v596 = vrot.slane %v587, 4
    %v597 = vrot.slane %v587, 6
    %v598 = vrot.slane %v594, 2
    %v599 = vrot.slane %v594, 4
    %v600 = vrot.slane %v594, 6
    %v609 = vadd.f32 %v243, %v587
    %v610 = vadd.f32 %v251, %v595
    %v611 = vadd.f32 %v259, %v596
    %v612 = vadd.f32 %v267, %v597
    %v613 = vadd.f32 %v275, %v594
    %v614 = vadd.f32 %v283, %v598
    %v615 = vadd.f32 %v291, %v599
    %v616 = vadd.f32 %v299, %v600
    %v619 = vrot.slane %v234, 2
    %v620 = vrot.slane %v234, 4
    %v621 = vrot.slane %v234, 6
    %v622 = vrot.slane %v235, 2
    %v623 = vrot.slane %v235, 4
    %v624 = vrot.slane %v235, 6
    %v631 = vadd.f32 %v609, %v234
    %v632 = vadd.f32 %v610, %v619
    %v633 = vadd.f32 %v611, %v620
    %v634 = vadd.f32 %v612, %v621
    %v635 = vadd.f32 %v613, %v235
    %v636 = vadd.f32 %v614, %v622
    %v637 = vadd.f32 %v615, %v623
    %v638 = vadd.f32 %v616, %v624
    %vm639 = vcmp.ge.f32.partialorder %v631, 0.0
    %vm640 = vcmp.ge.f32.partialorder %v632, 0.0
    %vm641 = vcmp.ge.f32.partialorder %v633, 0.0
    %vm642 = vcmp.ge.f32.partialorder %v634, 0.0
    %vm643 = vcmp.ge.f32.partialorder %v635, 0.0
    %vm644 = vcmp.ge.f32.partialorder %v636, 0.0
    %vm645 = vcmp.ge.f32.partialorder %v637, 0.0
    %vm646 = vcmp.ge.f32.partialorder %v638, 0.0
    %v647 = vmul.f32 %v631, 0.01
    %v648 = vmul.f32 %v632, 0.01
    %v649 = vmul.f32 %v633, 0.01
    %v650 = vmul.f32 %v634, 0.01
    %v651 = vmul.f32 %v635, 0.01
    %v652 = vmul.f32 %v636, 0.01
    %v653 = vmul.f32 %v637, 0.01
    %v654 = vmul.f32 %v638, 0.01
    %v655 = vsel %vm639, %v631, %v647
    %v656 = vsel %vm640, %v632, %v648
    %v657 = vsel %vm641, %v633, %v649
    %v658 = vsel %vm642, %v634, %v650
    %v659 = vsel %vm643, %v635, %v651
    %v660 = vsel %vm644, %v636, %v652
    %v661 = vsel %vm645, %v637, %v653
    %v662 = vsel %vm646, %v638, %v654
    %v663 = vld [vmem:[#allocation2] sm:$0xff]
    %v664 = vld [vmem:[#allocation2 + $0x8] sm:$0xff]
    %vm665 = vcmask 80896
    %v666 = vsel %vm665, %v663, -inf
    %667 = vmax.xlane.f32.xlu0 %v666
    %v668 = vpop.xlane.xlu0 %667
    %v669 = vsel %vm665, %v664, -inf
    %670 = vmax.xlane.f32.xlu0 %v669
    %v671 = vpop.xlane.xlu0 %670
    %vm672 = vcmp.le.f32.partialorder %v668, 0.0
    %vm673 = vcmp.le.f32.partialorder %v671, 0.0
    %vm674 = vcmp.gt.f32.partialorder %v663, 0.0
    %vm675 = vcmp.gt.f32.partialorder %v664, 0.0
    %684 = vst [vmem:[#allocation1] ss:$4 sm:$0xff] %v655
    %s685 = scalar_lea.vmem [#allocation1], 1
    %686 = vst [vmem:[%s685] ss:$4 sm:$0xff] %v656
    %s687 = scalar_lea.vmem [#allocation1], 2
    %688 = vst [vmem:[%s687] ss:$4 sm:$0xff] %v657
    %s689 = scalar_lea.vmem [#allocation1], 3
    %690 = vst [vmem:[%s689] ss:$4 sm:$0xff] %v658
    %v691 = vld.sshfl [vmem:[#allocation1] sm:$0xff pattern:$0x73625140]
    %s692 = scalar_lea.vmem [#allocation1], 32
    %693 = vst [vmem:[%s692] ss:$4 sm:$0xff] %v659
    %s694 = scalar_lea.vmem [#allocation1], 33
    %695 = vst [vmem:[%s694] ss:$4 sm:$0xff] %v660
    %s696 = scalar_lea.vmem [#allocation1], 34
    %697 = vst [vmem:[%s696] ss:$4 sm:$0xff] %v661
    %s698 = scalar_lea.vmem [#allocation1], 35
    %699 = vst [vmem:[%s698] ss:$4 sm:$0xff] %v662
    %v700 = vld.sshfl [vmem:[#allocation1 + $0x20] sm:$0xff pattern:$0x73625140]
    %v703 = vsel %vm674, %v691, -inf
    %v704 = vsel %vm675, %v700, -inf
    %v705 = vsel %vm672, 1, 0
    %v706 = vsel %vm673, 1, 0
    %vm707 = vcmp.eq.s32.totalorder %v705, 1
    %vm708 = vcmp.eq.s32.totalorder %v706, 1
    %v709 = vsel %vm707, 0.0, %v703
    %v710 = vsel %vm708, 0.0, %v704
    %v711 = vsel %vm665, %v709, -inf
    %712 = vmax.xlane.f32.xlu0 %v711
    %v713 = vpop.xlane.xlu0 %712
    %v714 = vsel %vm665, %v710, -inf
    %715 = vmax.xlane.f32.xlu0 %v714
    %v716 = vpop.xlane.xlu0 %715
    %v717 = vsub.f32 %v709, %v713
    %v718 = vsub.f32 %v710, %v716
    %v719 = vmul.f32 %v717, 1.442695
    %v720 = vpow.pop %v719
    %v721 = vmul.f32 %v718, 1.442695
    %v722 = vpow.pop %v721
    %v723 = vsel %vm665, %v720, 0.0
    %724 = vadd.xlane.f32.xlu0 %v723
    %v725 = vpop.xlane.xlu0 %724
    %v726 = vsel %vm665, %v722, 0.0
    %727 = vadd.xlane.f32.xlu0 %v726
    %v728 = vpop.xlane.xlu0 %727
    %v729 = vrcp.pop %v725
    %v730 = vmul.f32 %v725, %v729
    %v731 = vsub.f32 1.0, %v730
    %v732 = vmul.f32 %v729, %v731
    %v733 = vadd.f32 %v729, %v732
    %vm734 = vweird.f32 %v725
    %vm735 = vweird.f32 %v729
    %vm736 = vmor %vm734, %vm735
    %v737 = vsel %vm736, %v729, %v733
    %v738 = vand.u32 2147483647, %v725
    %vm739 = vcmp.eq.f32.partialorder %v738, 8.507059e+37
    %v740 = vand.u32 %v725, 2147483648
    %v741 = vor.u32 1.1754944e-38, %v740
    %v742 = vsel %vm739, %v741, %v737
    %v743 = vmul.f32 %v720, %v742
    %v744 = vrcp.pop %v728
    %v745 = vmul.f32 %v728, %v744
    %v746 = vsub.f32 1.0, %v745
    %v747 = vmul.f32 %v744, %v746
    %v748 = vadd.f32 %v744, %v747
    %vm749 = vweird.f32 %v728
    %vm750 = vweird.f32 %v744
    %vm751 = vmor %vm749, %vm750
    %v752 = vsel %vm751, %v744, %v748
    %v753 = vand.u32 2147483647, %v728
    %vm754 = vcmp.eq.f32.partialorder %v753, 8.507059e+37
    %v755 = vand.u32 %v728, 2147483648
    %v756 = vor.u32 1.1754944e-38, %v755
    %v757 = vsel %vm754, %v756, %v752
    %v758 = vmul.f32 %v722, %v757
    %v759 = vmul.f32 %v743, %v196
    %v760 = vmul.f32 %v758, %v200
    %v761 = vsel %vm665, %v759, 0.0
    %762 = vadd.xlane.f32.xlu0 %v761
    %v763 = vpop.xlane.xlu0 %762
    %v764 = vsel %vm665, %v760, 0.0
    %765 = vadd.xlane.f32.xlu0 %v764
    %v766 = vpop.xlane.xlu0 %765
    %vm767 = vcmp.eq.s32.totalorder %v523, 0
    %v768 = vsel %vm767, 1, 0
    %v769 = vcvt.s32.f32 %v768
    %v770 = vmul.f32 %v763, %v769
    %v771 = vmul.f32 %v766, %v769
    %v772 = vadd.f32 %v770, 0.0
    %v773 = vadd.f32 %v771, 0.0
    %v774 = vmul.f32 %v743, %v197
    %v775 = vmul.f32 %v758, %v201
    %v776 = vsel %vm665, %v774, 0.0
    %777 = vadd.xlane.f32.xlu0 %v776
    %v778 = vpop.xlane.xlu0 %777
    %v779 = vsel %vm665, %v775, 0.0
    %780 = vadd.xlane.f32.xlu0 %v779
    %v781 = vpop.xlane.xlu0 %780
    %vm782 = vcmp.eq.s32.totalorder %v523, 1
    %v783 = vsel %vm782, 1, 0
    %v784 = vcvt.s32.f32 %v783
    %v785 = vmul.f32 %v778, %v784
    %v786 = vmul.f32 %v781, %v784
    %v787 = vadd.f32 %v772, %v785
    %v788 = vadd.f32 %v773, %v786
    %v789 = vmul.f32 %v743, %v198
    %v790 = vmul.f32 %v758, %v202
    %v791 = vsel %vm665, %v789, 0.0
    %792 = vadd.xlane.f32.xlu0 %v791
    %v793 = vpop.xlane.xlu0 %792
    %v794 = vsel %vm665, %v790, 0.0
    %795 = vadd.xlane.f32.xlu0 %v794
    %v796 = vpop.xlane.xlu0 %795
    %vm797 = vcmp.eq.s32.totalorder %v523, 2
    %v798 = vsel %vm797, 1, 0
    %v799 = vcvt.s32.f32 %v798
    %v800 = vmul.f32 %v793, %v799
    %v801 = vmul.f32 %v796, %v799
    %v802 = vadd.f32 %v787, %v800
    %v803 = vadd.f32 %v788, %v801
    %v804 = vmul.f32 %v743, %v199
    %v805 = vmul.f32 %v758, %v203
    %v806 = vsel %vm665, %v804, 0.0
    %807 = vadd.xlane.f32.xlu0 %v806
    %v808 = vpop.xlane.xlu0 %807
    %v809 = vsel %vm665, %v805, 0.0
    %810 = vadd.xlane.f32.xlu0 %v809
    %v811 = vpop.xlane.xlu0 %810
    %vm812 = vcmp.eq.s32.totalorder %v523, 3
    %v813 = vsel %vm812, 1, 0
    %v814 = vcvt.s32.f32 %v813
    %v815 = vmul.f32 %v808, %v814
    %v816 = vmul.f32 %v811, %v814
    %v817 = vadd.f32 %v802, %v815
    %v818 = vadd.f32 %v803, %v816
    %vm819 = vcmask 31744
    %v821 = vsel %vm819, %v817, 0
    %v824 = vsel %vm819, %v818, 0
    %vm826 = vcmask 1043456
    %v828 = vsel %vm826, %v58, 0
    %830 = vmatpush.msra.mxu0 0.0
    %831 = vmatpush.msra.mxu0 0.0
    %832 = vmatpush.msra.mxu0 0.0
    %833 = vmatpush.msra.mxu0 0.0
    %834 = vmatpush.msra.mxu0 0.0
    %835 = vmatpush.msra.mxu0 0.0
    %836 = vmatpush.msra.mxu0 0.0
    %837 = vmatpush.msra.mxu0 0.0
    %838 = vmatpush.msra.mxu0 0.0
    %839 = vmatpush.msra.mxu0 0.0
    %840 = vmatpush.msra.mxu0 0.0
    %841 = vmatpush.msra.mxu0 0.0
    %842 = vmatpush.msra.mxu0 0.0
    %843 = vmatpush.msra.mxu0 0.0
    %844 = vmatpush.msra.mxu0 0.0
    %845 = vmatpush.msra.mxu0 %v828
    %846 = vmatmul.f32.gmra.mxu0 %v821
    %v847 = vpop.f32.mrf.mxu0
    %v848 = vadd.f32 0.0, %v847
    %849 = vmatmul.f32.gmra.mxu0 %v824
    %v850 = vpop.f32.mrf.mxu0
    %v851 = vadd.f32 0.0, %v850
    %852 = vdwg.mxu0
    %853 = vst [vmem:[#allocation1] ss:$4 sm:$0xff] %v147
    %s854 = scalar_lea.vmem [#allocation1], 1
    %855 = vst [vmem:[%s854] ss:$4 sm:$0xff] %v166
    %s856 = scalar_lea.vmem [#allocation1], 2
    %857 = vst [vmem:[%s856] ss:$4 sm:$0xff] %v167
    %s858 = scalar_lea.vmem [#allocation1], 3
    %859 = vst [vmem:[%s858] ss:$4 sm:$0xff] %v168
    %s860 = scalar_lea.vmem [#allocation1], 32
    %861 = vst [vmem:[%s860] ss:$4 sm:$0xff] %v150
    %v862 = vld.sshfl [vmem:[#allocation1] sm:$0xff pattern:$0x73625140]
    %v863 = vld.sshfl [vmem:[#allocation1 + $0x20] sm:$0xff pattern:$0x73625140]
    %v866 = vsel %vm665, %v743, 0
    %vm868 = vcmask 1041408
    %v869 = vsel %vm868, %v863, 0
    %871 = vmatpush.msra.mxu0 0.0
    %872 = vmatpush.msra.mxu0 0.0
    %873 = vmatpush.msra.mxu0 0.0
    %874 = vmatpush.msra.mxu0 0.0
    %875 = vmatpush.msra.mxu0 0.0
    %876 = vmatpush.msra.mxu0 0.0
    %877 = vmatpush.msra.mxu0 0.0
    %878 = vmatpush.msra.mxu0 0.0
    %879 = vmatpush.msra.mxu0 0.0
    %880 = vmatpush.msra.mxu0 0.0
    %881 = vmatpush.msra.mxu0 0.0
    %882 = vmatpush.msra.mxu0 0.0
    %883 = vmatpush.msra.mxu0 0.0
    %884 = vmatpush.msra.mxu0 0.0
    %885 = vmatpush.msra.mxu0 %v869
    %886 = vmatpush.msra.mxu0 %v862
    %887 = vmatmul.f32.gmra.mxu0 %v866
    %v888 = vpop.f32.mrf.mxu0
    %v889 = vadd.f32 %v848, %v888
    %890 = vdwg.mxu0
    %891 = vst [vmem:[#allocation1] ss:$4 sm:$0xff] %v172
    %s892 = scalar_lea.vmem [#allocation1], 1
    %893 = vst [vmem:[%s892] ss:$4 sm:$0xff] %v173
    %s894 = scalar_lea.vmem [#allocation1], 2
    %895 = vst [vmem:[%s894] ss:$4 sm:$0xff] %v174
    %s896 = scalar_lea.vmem [#allocation1], 3
    %897 = vst [vmem:[%s896] ss:$4 sm:$0xff] %v156
    %s898 = scalar_lea.vmem [#allocation1], 32
    %899 = vst [vmem:[%s898] ss:$4 sm:$0xff] %v175
    %v900 = vld.sshfl [vmem:[#allocation1] sm:$0xff pattern:$0x73625140]
    %v901 = vld.sshfl [vmem:[#allocation1 + $0x20] sm:$0xff pattern:$0x73625140]
    %v904 = vsel %vm665, %v758, 0
    %v906 = vsel %vm868, %v901, 0
    %908 = vmatpush.msra.mxu0 0.0
    %909 = vmatpush.msra.mxu0 0.0
    %910 = vmatpush.msra.mxu0 0.0
    %911 = vmatpush.msra.mxu0 0.0
    %912 = vmatpush.msra.mxu0 0.0
    %913 = vmatpush.msra.mxu0 0.0
    %914 = vmatpush.msra.mxu0 0.0
    %915 = vmatpush.msra.mxu0 0.0
    %916 = vmatpush.msra.mxu0 0.0
    %917 = vmatpush.msra.mxu0 0.0
    %918 = vmatpush.msra.mxu0 0.0
    %919 = vmatpush.msra.mxu0 0.0
    %920 = vmatpush.msra.mxu0 0.0
    %921 = vmatpush.msra.mxu0 0.0
    %922 = vmatpush.msra.mxu0 %v906
    %923 = vmatpush.msra.mxu0 %v900
    %924 = vmatmul.f32.gmra.mxu0 %v904
    %v925 = vpop.f32.mrf.mxu0
    %v926 = vadd.f32 %v851, %v925
    %927 = vdwg.mxu0
    %v928 = vsel %vm707, 0.0, %v889
    %v929 = vsel %vm708, 0.0, %v926
    %930 = vst [vmem:[#allocation1] ss:$4 sm:$0xff] %v169
    %s931 = scalar_lea.vmem [#allocation1], 1
    %932 = vst [vmem:[%s931] ss:$4 sm:$0xff] %v170
    %s933 = scalar_lea.vmem [#allocation1], 2
    %934 = vst [vmem:[%s933] ss:$4 sm:$0xff] %v171
    %s935 = scalar_lea.vmem [#allocation1], 3
    %936 = vst [vmem:[%s935] ss:$4 sm:$0xff] %v153
    %v937 = vld.sshfl [vmem:[#allocation1] sm:$0xff pattern:$0x73625140]
    %s938 = scalar_lea.vmem [#allocation1], 32
    %939 = vst [vmem:[%s938] ss:$4 sm:$0xff] %v176
    %s940 = scalar_lea.vmem [#allocation1], 33
    %941 = vst [vmem:[%s940] ss:$4 sm:$0xff] %v177
    %s942 = scalar_lea.vmem [#allocation1], 34
    %943 = vst [vmem:[%s942] ss:$4 sm:$0xff] %v159
    %s944 = scalar_lea.vmem [#allocation1], 35
    %945 = vst [vmem:[%s944] ss:$4 sm:$0xff] %v178
    %v946 = vld.sshfl [vmem:[#allocation1 + $0x20] sm:$0xff pattern:$0x73625140]
    %v949 = vadd.f32 %v928, %v937
    %v950 = vadd.f32 %v929, %v946
    %vm951 = vcmp.ge.f32.partialorder %v949, 0.0
    %vm952 = vcmp.ge.f32.partialorder %v950, 0.0
    %v953 = vmul.f32 %v949, 1.442695
    %v954 = vpow.pop %v953
    %v955 = vmul.f32 %v950, 1.442695
    %v956 = vpow.pop %v955
    %v957 = vsub.f32 %v954, 1.0
    %v958 = vsub.f32 %v956, 1.0
    %v959 = vsel %vm951, %v949, %v957
    %v960 = vsel %vm952, %v950, %v958
    %vm961 = vcmask 130048
    %962 = vst.msk [vmem:[#allocation7] sm:$0xff] %vm961, %v959
    %963 = vst.msk [vmem:[#allocation7 + $0x8] sm:$0xff] %vm961, %v960
    // Predicated region
    $region34: #{tpu_custom_call.1} parent=1 // pred_check
      _
    $region35: #{tpu_custom_call.1} parent=1 // pred_check_branch
      %965 = sbr.rel (0) target = $region37
    $region36: #{tpu_custom_call.1} parent=1 // pred_region
      %967 = vsyncadd [#allocation4], 0
      %s968 = sshll.u32 [#allocation7], 4
      %s969 = int_to_ptr.vmem [resolvable:$true] %s968
      %s970 = sshll.u32 %s6, 4
      %s971 = int_to_ptr.hbm [resolvable:$true] %s970
      %976 = dma.vmem_to_hbm [thread:$0]  %s969, 256, %s971, [#allocation4], 128, 128, 8
    $region37: #{tpu_custom_call.1} parent=1 // pred_fallthru
      _
    // Predicated region
    $region38: #{tpu_custom_call.1} parent=1 // pred_check
      _
    $region39: #{tpu_custom_call.1} parent=1 // pred_check_branch
      %978 = sbr.rel (0) target = $region41
    $region40: #{tpu_custom_call.1} parent=1 // pred_region
      %980 = dma.done [#allocation4], 256
    $region41: #{tpu_custom_call.1} parent=1 // pred_fallthru
      _
    %981 = vsyncpa [#allocation3], 1
    %982 = vsyncpa [#allocation6], 1
    %983 = vsyncpa [#allocation4], 1

</llo_original>
